<compile_context>
chip_gen: v6e
topology: v6e:2x2x1
jax: 0.10.0
libtpu: 0.0.40
codegen_flags: <defaults>
</compile_context>

<pallas_src>
import jax
import jax.numpy as jnp
from jax import lax
from jax.experimental import pallas as pl
from jax.experimental.pallas import tpu as pltpu


_VMEM_SPEC = pl.BlockSpec(memory_space=pltpu.MemorySpace.VMEM)


# ----------------------------- Pallas kernels -------------------------------


def _complex_spmm_kernel(a_ref, br_ref, bi_ref, out_ref):
    """[C_r | C_i] = (A_r + i*A_i) @ (B_r + i*B_i) in ONE MXU pass.

    a_ref  : (2M, K)  [A_r ; A_i] = [c_tilde^T + u_r ; u_i] (sublane-stacked)
    br_ref : (K, N)   real(atomic_basis)
    bi_ref : (K, N)   imag(atomic_basis)
    out_ref: (M, 2N)  [C_r | C_i]
    """
    M = out_ref.shape[0]
    N = br_ref.shape[1]
    # Lane-aligned concat (N multiple of 128) -> pure vreg placement, no XLU.
    b = jnp.concatenate([br_ref[...], bi_ref[...]], axis=1)            # (K, 2N)
    # Single (2M,K)@(K,2N) matmul: one weight latch + stream on the MXU.
    p = jnp.dot(a_ref[...], b, preferred_element_type=jnp.float32)     # (2M, 2N)
    # C_r = A_r@B_r - A_i@B_i ; C_i = A_r@B_i + A_i@B_r
    c_r = p[:M, :N] - p[M:, N:]
    c_i = p[:M, N:] + p[M:, :N]
    out_ref[...] = jnp.concatenate([c_r, c_i], axis=1)                 # one store


def _real_spmm_kernel(a_ref, br_ref, bi_ref, out_ref):
    """[C_r | C_i] = A_r @ (B_r + i*B_i) as a single MXU matmul.

    a_ref  : (M, K)  c_tilde^T, pre-transposed in the wrapper (no in-kernel
             contracting-dim-0 LHS -> no XLU transpose).
    """
    b = jnp.concatenate([br_ref[...], bi_ref[...]], axis=1)            # (K, 2N)
    out_ref[...] = jnp.dot(a_ref[...], b, preferred_element_type=jnp.float32)


# ------------------------------ JAX wrappers ---------------------------------


def _make_call(kernel, lhs_rows, M, K, N):
    flops = 2 * lhs_rows * K * (2 * N)
    bytes_accessed = 4 * (lhs_rows * K + 2 * K * N + M * 2 * N)
    return pl.pallas_call(
        kernel,
        out_shape=jax.ShapeDtypeStruct((M, 2 * N), jnp.float32),
        in_specs=[_VMEM_SPEC] * 3,
        out_specs=_VMEM_SPEC,
        cost_estimate=pl.CostEstimate(
            flops=flops, transcendentals=0, bytes_accessed=bytes_accessed),
    )


def _check_alignment(M, N):
    # Perf-cliff guard (masked stores / relayouts otherwise), not a correctness issue.
    assert M % 8 == 0 and N % 128 == 0, (
        f"M={M} must be a multiple of 8 and N={N} a multiple of 128")


@jax.jit
def _contract_with_update(ct_km, u_r, u_i, atomic_basis):
    K, M = ct_km.shape
    N = atomic_basis.shape[1]
    _check_alignment(M, N)
    # Fold c_tilde^T into the real update (tiny fused XLA add + transpose) and
    # sublane-stack with the imaginary update -> single (2M, K) LHS operand.
    a = jnp.concatenate(
        [ct_km.T.astype(jnp.float32) + u_r.astype(jnp.float32),
         u_i.astype(jnp.float32)],
        axis=0)                                                         # (2M, K)
    slab = _make_call(_complex_spmm_kernel, 2 * M, M, K, N)(
        a,
        jnp.real(atomic_basis).astype(jnp.float32),
        jnp.imag(atomic_basis).astype(jnp.float32),
    )
    return lax.complex(slab[:, :N], slab[:, N:])


@jax.jit
def _contract_no_update(ct_km, atomic_basis):
    K, M = ct_km.shape
    N = atomic_basis.shape[1]
    _check_alignment(M, N)
    slab = _make_call(_real_spmm_kernel, M, M, K, N)(
        ct_km.T.astype(jnp.float32),      # cheap XLA transpose, fuses upstream
        jnp.real(atomic_basis).astype(jnp.float32),
        jnp.imag(atomic_basis).astype(jnp.float32),
    )
    return lax.complex(slab[:, :N], slab[:, N:])


def vector_contract_forward(data):
    """JAX/Pallas port of MACE vector_contract.forward (dict in / dict out)."""
    atomic_basis = data["atomic_basis"]          # (K, N) complex64
    ct_km = data["c_tildes_dict_w"][1]           # (K, M)
    if "a_update" in data:
        u_r, u_i = data["a_update"][0], data["a_update"][1]
        out = _contract_with_update(ct_km, u_r, u_i, atomic_basis)
    else:
        out = _contract_no_update(ct_km, atomic_basis)
    new_data = dict(data)
    new_data["a_update"] = out
    return new_data


# ---------------------------------- main -------------------------------------


if __name__ == "__main__":
    # Small shapes: M = 32 coupled channels, K = 256 contraction dim, N = 128 atoms.
    M, K, N = 32, 256, 128
    key = jax.random.PRNGKey(0)
    k1, k2, k3, k4, k5 = jax.random.split(key, 5)

    c_tilde_w1 = jax.random.normal(k1, (K, M), dtype=jnp.float32)   # pre-transpose (K, M)
    basis_r = jax.random.normal(k2, (K, N), dtype=jnp.float32)
    basis_i = jax.random.normal(k3, (K, N), dtype=jnp.float32)
    atomic_basis = lax.complex(basis_r, basis_i)
    a_upd_r = jax.random.normal(k4, (M, K), dtype=jnp.float32)
    a_upd_i = jax.random.normal(k5, (M, K), dtype=jnp.float32)

    # --- branch with 'a_update' present --------------------------------------
    data = {
        "atomic_basis": atomic_basis,
        "c_tildes_dict_w": {1: c_tilde_w1},
        "a_update": (a_upd_r, a_upd_i),
    }
    out = vector_contract_forward(data)
    result = jax.block_until_ready(out["a_update"])

    A = lax.complex(c_tilde_w1.T + a_upd_r, a_upd_i)
    ref = A @ atomic_basis
    assert result.shape == (M, N) and result.dtype == jnp.complex64
    assert jnp.allclose(result, ref, rtol=1e-4, atol=1e-4)

    # --- branch without 'a_update' --------------------------------------------
    data2 = {
        "atomic_basis": atomic_basis,
        "c_tildes_dict_w": {1: c_tilde_w1},
    }
    out2 = vector_contract_forward(data2)
    result2 = jax.block_until_ready(out2["a_update"])
    ref2 = lax.complex(c_tilde_w1.T, jnp.zeros((M, K), jnp.float32)) @ atomic_basis
    assert jnp.allclose(result2, ref2, rtol=1e-4, atol=1e-4)

    print("KERNEL_OK")
</pallas_src>

<mosaic_0001>
module attributes {stable_mosaic.version = 11 : i64} {
  func.func @_complex_spmm_kernel(%arg0: memref<64x256xf32, #tpu.memory_space<vmem>>, %arg1: memref<256x128xf32, #tpu.memory_space<vmem>>, %arg2: memref<256x128xf32, #tpu.memory_space<vmem>>, %arg3: memref<32x256xf32, #tpu.memory_space<vmem>>) attributes {dimension_semantics = [], scalar_prefetch = 0 : i64, scratch_operands = 0 : i64, tpu.core_type = #tpu.core_type<tc>} {
    %c0 = arith.constant 0 : index
    %c0_0 = arith.constant 0 : index
    %0 = vector.load %arg1[%c0, %c0_0] : memref<256x128xf32, #tpu.memory_space<vmem>>, vector<256x128xf32>
    %c0_1 = arith.constant 0 : index
    %c0_2 = arith.constant 0 : index
    %1 = vector.load %arg2[%c0_1, %c0_2] : memref<256x128xf32, #tpu.memory_space<vmem>>, vector<256x128xf32>
    %2 = tpu.concatenate %0, %1 in 1 : vector<256x128xf32>, vector<256x128xf32> -> vector<256x256xf32>
    %c0_3 = arith.constant 0 : index
    %c0_4 = arith.constant 0 : index
    %3 = vector.load %arg0[%c0_3, %c0_4] : memref<64x256xf32, #tpu.memory_space<vmem>>, vector<64x256xf32>
    %cst = arith.constant dense<0.000000e+00> : vector<64x256xf32>
    %4 = tpu.matmul %3, %2, %cst {dimension_numbers = #tpu.dot_dimension_numbers<[1], [0], [0], [1], [0, 0, 1, 1], [], []>} : vector<64x256xf32>, vector<256x256xf32>, vector<64x256xf32> -> vector<64x256xf32>
    %5 = vector.extract_strided_slice %4 {offsets = [0, 0], sizes = [32, 128], strides = [1, 1]} : vector<64x256xf32> to vector<32x128xf32>
    %6 = vector.extract_strided_slice %4 {offsets = [32, 128], sizes = [32, 128], strides = [1, 1]} : vector<64x256xf32> to vector<32x128xf32>
    %7 = arith.subf %5, %6 : vector<32x128xf32>
    %8 = vector.extract_strided_slice %4 {offsets = [0, 128], sizes = [32, 128], strides = [1, 1]} : vector<64x256xf32> to vector<32x128xf32>
    %9 = vector.extract_strided_slice %4 {offsets = [32, 0], sizes = [32, 128], strides = [1, 1]} : vector<64x256xf32> to vector<32x128xf32>
    %10 = arith.addf %8, %9 : vector<32x128xf32>
    %11 = tpu.concatenate %7, %10 in 1 : vector<32x128xf32>, vector<32x128xf32> -> vector<32x256xf32>
    %c0_5 = arith.constant 0 : index
    %c0_6 = arith.constant 0 : index
    %12 = vector.load %arg3[%c0_5, %c0_6] : memref<32x256xf32, #tpu.memory_space<vmem>>, vector<32x256xf32>
    tpu.vector_store %arg3[%c0_5, %c0_6], %11 {strides = array<i32>} : memref<32x256xf32, #tpu.memory_space<vmem>>, vector<32x256xf32>,
    return
  }
}

</mosaic_0001>

<llo_original>
// kernel: custom-call.1
$region0: #{custom-call.1}
  %s0 = inlined_call_operand.hbm [shape: c64[256,128], index: 0, kind: input, shape index: {}]
  %s1 = inlined_call_operand.vmem [shape: f32[256,128], index: 1, kind: output, shape index: {}]
  %s2 = scalar_lea.hbm %s0, 4096
  $region1: #{custom-call.1} parent=0
    #allocation0 [shape = 's32[1]{0}', space=sflag, size = 0x4, scoped, tag = 'scoped memory for custom-call.1']
    %3 = vsyncpa [#allocation0], 0
    %s4 = sshll.u32 %s1, 4
    %s5 = int_to_ptr.vmem [resolvable:$true] %s4
    %7 = dma.hbm_to_vmem [thread:$0]  %s2, 4096, %s5, [#allocation0]
    %8 = dma.done [#allocation0], 4096
    %9 = vsyncpa [#allocation0], 1

// kernel: custom-call
$region0: #{custom-call}
  %s0 = inlined_call_operand.hbm [shape: c64[256,128], index: 0, kind: input, shape index: {}]
  %s1 = inlined_call_operand.vmem [shape: f32[256,128], index: 1, kind: output, shape index: {}]
  $region1: #{custom-call} parent=0
    #allocation0 [shape = 's32[1]{0}', space=sflag, size = 0x4, scoped, tag = 'scoped memory for custom-call']
    %2 = vsyncpa [#allocation0], 0
    %s3 = sshll.u32 %s1, 4
    %s4 = int_to_ptr.vmem [resolvable:$true] %s3
    %6 = dma.hbm_to_vmem [thread:$0]  %s0, 4096, %s4, [#allocation0]
    %7 = dma.done [#allocation0], 4096
    %8 = vsyncpa [#allocation0], 1

// kernel: custom-call.2
$region0: #{custom-call.2}
  %s0 = inlined_call_operand.vmem [shape: f32[32,128], index: 0, kind: input, shape index: {}]
  %s1 = inlined_call_operand.vmem [shape: f32[32,128], index: 1, kind: input, shape index: {}]
  %s2 = inlined_call_operand.hbm [shape: c64[32,128], index: 2, kind: output, shape index: {}]
  %s3 = scalar_lea.hbm %s2, 512
  $region1: #{custom-call.2} parent=0
    #allocation0 [shape = 's32[1]{0}', space=sflag, size = 0x4, scoped, tag = 'scoped memory for custom-call.2']
    %4 = vsyncpa [#allocation0], 0
    %s5 = sshll.u32 %s0, 4
    %s6 = int_to_ptr.vmem [resolvable:$true] %s5
    %8 = dma.vmem_to_hbm [thread:$0]  %s6, 512, %s2, [#allocation0]
    %9 = dma.done [#allocation0], 512
    %10 = vsyncpa [#allocation0], 1
  $region2: #{custom-call.2} parent=0
    #allocation1 [shape = 's32[1]{0}', space=sflag, size = 0x4, scoped, tag = 'scoped memory for custom-call.2']
    %11 = vsyncpa [#allocation1], 0
    %s12 = sshll.u32 %s1, 4
    %s13 = int_to_ptr.vmem [resolvable:$true] %s12
    %15 = dma.vmem_to_hbm [thread:$0]  %s13, 512, %s3, [#allocation1]
    %16 = dma.done [#allocation1], 512
    %17 = vsyncpa [#allocation1], 1

// kernel: _contract_with_update.1
$region0: #{_contract_with_update.1}
  #allocation0 [shape = 'u32[]', space=smem, size = 0x4, offset = 0x4, fixed_abs, tag = 'smem constant byte address 0x4 - core index']
  #allocation1 [shape = 'u32[144,128]{1,0:T(1,128)}', space=vmem, size = 0x12000, scoped, tag = 'internal scratch']
  %s0 = inlined_call_operand.vmem [shape: f32[64,256], index: 0, kind: input, shape index: {}]
  %s1 = inlined_call_operand.vmem [shape: f32[256,128], index: 1, kind: input, shape index: {}]
  %s2 = inlined_call_operand.vmem [shape: f32[256,128], index: 2, kind: input, shape index: {}]
  %s3 = inlined_call_operand.vmem [shape: f32[32,256], index: 3, kind: output, shape index: {}]
  %s4 = sld [smem:[#allocation0]]
  $region22: #{_contract_with_update.1} parent=0
    _
  %s6 = ssub.s32 1, %s4
  %s7 = scalar_select 0, %s6, %s4
  // Predicated region
  $region2: #{_contract_with_update.1} parent=0 // pred_check
    _
  $region3: #{_contract_with_update.1} parent=0 // pred_check_branch
    %9 = sbr.rel (0) target = $region5
  $region4: #{_contract_with_update.1} parent=0 // pred_region
    _
  $region5: #{_contract_with_update.1} parent=0 // pred_fallthru
    _
  // Predicated region
  $region6: #{_contract_with_update.1} parent=0 // pred_check
    _
  $region7: #{_contract_with_update.1} parent=0 // pred_check_branch
    %11 = sbr.rel (0) target = $region9
  $region8: #{_contract_with_update.1} parent=0 // pred_region
    _
  $region9: #{_contract_with_update.1} parent=0 // pred_fallthru
    _
  // Predicated region
  $region10: #{_contract_with_update.1} parent=0 // pred_check
    _
  $region11: #{_contract_with_update.1} parent=0 // pred_check_branch
    %13 = sbr.rel (0) target = $region13
  $region12: #{_contract_with_update.1} parent=0 // pred_region
    _
  $region13: #{_contract_with_update.1} parent=0 // pred_fallthru
    _
  %v14 = vld [vmem:[%s1] sm:$0xff]
  %v15 = vld [vmem:[%s1 + $0x8] sm:$0xff]
  %v16 = vld [vmem:[%s1 + $0x10] sm:$0xff]
  %v17 = vld [vmem:[%s1 + $0x18] sm:$0xff]
  %v18 = vld [vmem:[%s1 + $0x20] sm:$0xff]
  %v19 = vld [vmem:[%s1 + $0x28] sm:$0xff]
  %v20 = vld [vmem:[%s1 + $0x30] sm:$0xff]
  %v21 = vld [vmem:[%s1 + $0x38] sm:$0xff]
  %v22 = vld [vmem:[%s1 + $0x40] sm:$0xff]
  %v23 = vld [vmem:[%s1 + $0x48] sm:$0xff]
  %v24 = vld [vmem:[%s1 + $0x50] sm:$0xff]
  %v25 = vld [vmem:[%s1 + $0x58] sm:$0xff]
  %v26 = vld [vmem:[%s1 + $0x60] sm:$0xff]
  %v27 = vld [vmem:[%s1 + $0x68] sm:$0xff]
  %v28 = vld [vmem:[%s1 + $0x70] sm:$0xff]
  %v29 = vld [vmem:[%s1 + $0x78] sm:$0xff]
  %v30 = vld [vmem:[%s1 + $0x80] sm:$0xff]
  %v31 = vld [vmem:[%s1 + $0x88] sm:$0xff]
  %v32 = vld [vmem:[%s1 + $0x90] sm:$0xff]
  %v33 = vld [vmem:[%s1 + $0x98] sm:$0xff]
  %v34 = vld [vmem:[%s1 + $0xa0] sm:$0xff]
  %v35 = vld [vmem:[%s1 + $0xa8] sm:$0xff]
  %v36 = vld [vmem:[%s1 + $0xb0] sm:$0xff]
  %v37 = vld [vmem:[%s1 + $0xb8] sm:$0xff]
  %v38 = vld [vmem:[%s1 + $0xc0] sm:$0xff]
  %v39 = vld [vmem:[%s1 + $0xc8] sm:$0xff]
  %v40 = vld [vmem:[%s1 + $0xd0] sm:$0xff]
  %v41 = vld [vmem:[%s1 + $0xd8] sm:$0xff]
  %v42 = vld [vmem:[%s1 + $0xe0] sm:$0xff]
  %v43 = vld [vmem:[%s1 + $0xe8] sm:$0xff]
  %v44 = vld [vmem:[%s1 + $0xf0] sm:$0xff]
  %v45 = vld [vmem:[%s1 + $0xf8] sm:$0xff]
  %v46 = vld [vmem:[%s2] sm:$0xff]
  %v47 = vld [vmem:[%s2 + $0x8] sm:$0xff]
  %v48 = vld [vmem:[%s2 + $0x10] sm:$0xff]
  %v49 = vld [vmem:[%s2 + $0x18] sm:$0xff]
  %v50 = vld [vmem:[%s2 + $0x20] sm:$0xff]
  %v51 = vld [vmem:[%s2 + $0x28] sm:$0xff]
  %v52 = vld [vmem:[%s2 + $0x30] sm:$0xff]
  %v53 = vld [vmem:[%s2 + $0x38] sm:$0xff]
  %v54 = vld [vmem:[%s2 + $0x40] sm:$0xff]
  %v55 = vld [vmem:[%s2 + $0x48] sm:$0xff]
  %v56 = vld [vmem:[%s2 + $0x50] sm:$0xff]
  %v57 = vld [vmem:[%s2 + $0x58] sm:$0xff]
  %v58 = vld [vmem:[%s2 + $0x60] sm:$0xff]
  %v59 = vld [vmem:[%s2 + $0x68] sm:$0xff]
  %v60 = vld [vmem:[%s2 + $0x70] sm:$0xff]
  %v61 = vld [vmem:[%s2 + $0x78] sm:$0xff]
  %v62 = vld [vmem:[%s2 + $0x80] sm:$0xff]
  %v63 = vld [vmem:[%s2 + $0x88] sm:$0xff]
  %v64 = vld [vmem:[%s2 + $0x90] sm:$0xff]
  %v65 = vld [vmem:[%s2 + $0x98] sm:$0xff]
  %v66 = vld [vmem:[%s2 + $0xa0] sm:$0xff]
  %v67 = vld [vmem:[%s2 + $0xa8] sm:$0xff]
  %v68 = vld [vmem:[%s2 + $0xb0] sm:$0xff]
  %v69 = vld [vmem:[%s2 + $0xb8] sm:$0xff]
  %v70 = vld [vmem:[%s2 + $0xc0] sm:$0xff]
  %v71 = vld [vmem:[%s2 + $0xc8] sm:$0xff]
  %v72 = vld [vmem:[%s2 + $0xd0] sm:$0xff]
  %v73 = vld [vmem:[%s2 + $0xd8] sm:$0xff]
  %v74 = vld [vmem:[%s2 + $0xe0] sm:$0xff]
  %v75 = vld [vmem:[%s2 + $0xe8] sm:$0xff]
  %v76 = vld [vmem:[%s2 + $0xf0] sm:$0xff]
  %v77 = vld [vmem:[%s2 + $0xf8] sm:$0xff]
  %v78 = vld [vmem:[%s0] sm:$0xff]
  %v79 = vld [vmem:[%s0 + $0x8] sm:$0xff]
  %v80 = vld [vmem:[%s0 + $0x10] sm:$0xff]
  %v81 = vld [vmem:[%s0 + $0x18] sm:$0xff]
  %v82 = vld [vmem:[%s0 + $0x20] sm:$0xff]
  %v83 = vld [vmem:[%s0 + $0x28] sm:$0xff]
  %v84 = vld [vmem:[%s0 + $0x30] sm:$0xff]
  %v85 = vld [vmem:[%s0 + $0x38] sm:$0xff]
  %v86 = vld [vmem:[%s0 + $0x40] sm:$0xff]
  %v87 = vld [vmem:[%s0 + $0x48] sm:$0xff]
  %v88 = vld [vmem:[%s0 + $0x50] sm:$0xff]
  %v89 = vld [vmem:[%s0 + $0x58] sm:$0xff]
  %v90 = vld [vmem:[%s0 + $0x60] sm:$0xff]
  %v91 = vld [vmem:[%s0 + $0x68] sm:$0xff]
  %v92 = vld [vmem:[%s0 + $0x70] sm:$0xff]
  %v93 = vld [vmem:[%s0 + $0x78] sm:$0xff]
  %94 = vmatprep.subr.mxu0 %v61
  %95 = vmatpush1.msra.mxu0 %v29
  %96 = vmatprep.subr.mxu0 %v60
  %97 = vmatpush1.msra.mxu0 %v28
  %98 = vmatprep.subr.mxu0 %v59
  %99 = vmatpush1.msra.mxu0 %v27
  %100 = vmatprep.subr.mxu0 %v58
  %101 = vmatpush1.msra.mxu0 %v26
  %102 = vmatprep.subr.mxu0 %v57
  %103 = vmatpush1.msra.mxu0 %v25
  %104 = vmatprep.subr.mxu0 %v56
  %105 = vmatpush1.msra.mxu0 %v24
  %106 = vmatprep.subr.mxu0 %v55
  %107 = vmatpush1.msra.mxu0 %v23
  %108 = vmatprep.subr.mxu0 %v54
  %109 = vmatpush1.msra.mxu0 %v22
  %110 = vmatprep.subr.mxu0 %v53
  %111 = vmatpush1.msra.mxu0 %v21
  %112 = vmatprep.subr.mxu0 %v52
  %113 = vmatpush1.msra.mxu0 %v20
  %114 = vmatprep.subr.mxu0 %v51
  %115 = vmatpush1.msra.mxu0 %v19
  %116 = vmatprep.subr.mxu0 %v50
  %117 = vmatpush1.msra.mxu0 %v18
  %118 = vmatprep.subr.mxu0 %v49
  %119 = vmatpush1.msra.mxu0 %v17
  %120 = vmatprep.subr.mxu0 %v48
  %121 = vmatpush1.msra.mxu0 %v16
  %122 = vmatprep.subr.mxu0 %v47
  %123 = vmatpush1.msra.mxu0 %v15
  %124 = vmatprep.subr.mxu0 %v46
  %125 = vmatpush1.msra.mxu0 %v14
  %126 = vmatprep.subr.mxu0 %v77
  %127 = vmatpush2.msra.mxu0 %v45
  %128 = vmatprep.subr.mxu0 %v76
  %129 = vmatpush2.msra.mxu0 %v44
  %130 = vmatprep.subr.mxu0 %v75
  %131 = vmatpush2.msra.mxu0 %v43
  %132 = vmatprep.subr.mxu0 %v74
  %133 = vmatpush2.msra.mxu0 %v42
  %134 = vmatprep.subr.mxu0 %v73
  %135 = vmatpush2.msra.mxu0 %v41
  %136 = vmatprep.subr.mxu0 %v72
  %137 = vmatpush2.msra.mxu0 %v40
  %138 = vmatprep.subr.mxu0 %v71
  %139 = vmatpush2.msra.mxu0 %v39
  %140 = vmatprep.subr.mxu0 %v70
  %141 = vmatpush2.msra.mxu0 %v38
  %142 = vmatprep.subr.mxu0 %v69
  %143 = vmatpush2.msra.mxu0 %v37
  %144 = vmatprep.subr.mxu0 %v68
  %145 = vmatpush2.msra.mxu0 %v36
  %146 = vmatprep.subr.mxu0 %v67
  %147 = vmatpush2.msra.mxu0 %v35
  %148 = vmatprep.subr.mxu0 %v66
  %149 = vmatpush2.msra.mxu0 %v34
  %150 = vmatprep.subr.mxu0 %v65
  %151 = vmatpush2.msra.mxu0 %v33
  %152 = vmatprep.subr.mxu0 %v64
  %153 = vmatpush2.msra.mxu0 %v32
  %154 = vmatprep.subr.mxu0 %v63
  %155 = vmatpush2.msra.mxu0 %v31
  %156 = vmatprep.subr.mxu0 %v62
  %157 = vmatpush2.msra.mxu0 %v30
  %158 = vmatprep.mubr.f32.mxu0 %v79
  %159 = vmatmul.mubr.f32.gmra.mxu0 %v78
  %v160 = vpop.f32.mrf.mxu0
  %v161 = vadd.f32 0.0, %v160
  %v162 = vpop.f32.mrf.mxu0
  %v163 = vadd.f32 0.0, %v162
  %164 = vmatprep.mubr.f32.mxu0 %v81
  %165 = vmatmul.mubr.f32.gmra.mxu0 %v80
  %v166 = vpop.f32.mrf.mxu0
  %v167 = vadd.f32 0.0, %v166
  %v168 = vpop.f32.mrf.mxu0
  %v169 = vadd.f32 0.0, %v168
  %170 = vmatprep.mubr.f32.mxu0 %v83
  %171 = vmatmul.mubr.f32.gmra.mxu0 %v82
  %v172 = vpop.f32.mrf.mxu0
  %v173 = vadd.f32 0.0, %v172
  %v174 = vpop.f32.mrf.mxu0
  %v175 = vadd.f32 0.0, %v174
  %176 = vmatprep.mubr.f32.mxu0 %v85
  %177 = vmatmul.mubr.f32.gmra.mxu0 %v84
  %v178 = vpop.f32.mrf.mxu0
  %v179 = vadd.f32 0.0, %v178
  %v180 = vpop.f32.mrf.mxu0
  %v181 = vadd.f32 0.0, %v180
  %182 = vmatprep.mubr.f32.mxu0 %v87
  %183 = vmatmul.mubr.f32.gmra.mxu0 %v86
  %v184 = vpop.f32.mrf.mxu0
  %v185 = vadd.f32 0.0, %v184
  %v186 = vpop.f32.mrf.mxu0
  %v187 = vadd.f32 0.0, %v186
  %188 = vmatprep.mubr.f32.mxu0 %v89
  %189 = vmatmul.mubr.f32.gmra.mxu0 %v88
  %v190 = vpop.f32.mrf.mxu0
  %v191 = vadd.f32 0.0, %v190
  %v192 = vpop.f32.mrf.mxu0
  %v193 = vadd.f32 0.0, %v192
  %194 = vmatprep.mubr.f32.mxu0 %v91
  %195 = vmatmul.mubr.f32.gmra.mxu0 %v90
  %v196 = vpop.f32.mrf.mxu0
  %v197 = vadd.f32 0.0, %v196
  %v198 = vpop.f32.mrf.mxu0
  %v199 = vadd.f32 0.0, %v198
  %200 = vmatprep.mubr.f32.mxu0 %v93
  %201 = vmatmul.mubr.f32.gmra.mxu0 %v92
  %v202 = vpop.f32.mrf.mxu0
  %v203 = vadd.f32 0.0, %v202
  %v204 = vpop.f32.mrf.mxu0
  %v205 = vadd.f32 0.0, %v204
  %206 = vdwg.mxu0
  %v207 = vsub.f32 %v161, %v187
  %v208 = vsub.f32 %v167, %v193
  %v209 = vsub.f32 %v173, %v199
  %v210 = vsub.f32 %v179, %v205
  %v211 = vadd.f32 %v163, %v185
  %v212 = vadd.f32 %v169, %v191
  %v213 = vadd.f32 %v175, %v197
  %v214 = vadd.f32 %v181, %v203
  %215 = vst [vmem:[%s3] sm:$0xff] %v207
  %216 = vst [vmem:[%s3 + $0x8] sm:$0xff] %v211
  %217 = vst [vmem:[%s3 + $0x10] sm:$0xff] %v208
  %218 = vst [vmem:[%s3 + $0x18] sm:$0xff] %v212
  %219 = vst [vmem:[%s3 + $0x20] sm:$0xff] %v209
  %220 = vst [vmem:[%s3 + $0x28] sm:$0xff] %v213
  %221 = vst [vmem:[%s3 + $0x30] sm:$0xff] %v210
  %222 = vst [vmem:[%s3 + $0x38] sm:$0xff] %v214
  // Predicated region
  $region14: #{_contract_with_update.1} parent=0 // pred_check
    _
  $region15: #{_contract_with_update.1} parent=0 // pred_check_branch
    %224 = sbr.rel (0) target = $region17
  $region16: #{_contract_with_update.1} parent=0 // pred_region
    _
  $region17: #{_contract_with_update.1} parent=0 // pred_fallthru
    _
  // Predicated region
  $region18: #{_contract_with_update.1} parent=0 // pred_check
    _
  $region19: #{_contract_with_update.1} parent=0 // pred_check_branch
    %226 = sbr.rel (0) target = $region21
  $region20: #{_contract_with_update.1} parent=0 // pred_region
    _
  $region21: #{_contract_with_update.1} parent=0 // pred_fallthru
    _

</llo_original>
